<compile_context>
chip_gen: v7x
topology: tpu7x:2x2x1
jax: 0.10.0
libtpu: 0.0.40
codegen_flags: <defaults>
</compile_context>

<pallas_src>
import functools

import numpy as np
import jax
import jax.numpy as jnp
from jax.experimental import pallas as pl
from jax.experimental.pallas import tpu as pltpu


def _round_up(x: int, m: int) -> int:
    return ((x + m - 1) // m) * m


def _cdiv(a: int, b: int) -> int:
    return (a + b - 1) // b


def _fast_sigmoid(x):
    # exp and the approximate reciprocal both issue on the EUP slot, keeping
    # the epilogue off the VALU (helps small/moderate D; neutral when MXU/HBM
    # bound).
    return pl.reciprocal(1.0 + jnp.exp(-x), approx=True)


def _exact_sigmoid(x):
    return 1.0 / (1.0 + jnp.exp(-x))


def _glu_kernel(x_ref, w_ref, b_ref, o_ref, *, gate_fn):
    """One (row-tile, column-tile) of the GLU.

    x_ref: (tm, D)     input rows, original dtype (cast in-kernel)
    w_ref: (2, D, tn)  packed [Wv_j ; Wg_j] column slab, compute dtype
    b_ref: (2, 1, tn)  packed [bv_j ; bg_j], f32
    o_ref: (tm, <=tn)  output tile
    """
    x = x_ref[...].astype(w_ref.dtype)                  # in-kernel cast (VPU)
    val = jnp.dot(x, w_ref[0], preferred_element_type=jnp.float32) + b_ref[0]
    pre = jnp.dot(x, w_ref[1], preferred_element_type=jnp.float32) + b_ref[1]
    out = val * gate_fn(pre)                            # f32 epilogue
    o_ref[...] = out[:, : o_ref.shape[-1]].astype(o_ref.dtype)


def prepare_params(weight, bias, *, compute_dtype=jnp.bfloat16):
    """One-time parameter preparation (NOT per forward pass).

    weight: (2D, D)  PyTorch-layout Linear weight
    bias:   (2D,)    PyTorch-layout Linear bias

    Returns (w3, b3):
      w3: (2, D, Np)  [Wv ; Wg], transposed, output columns zero-padded to
                      lane-dense Np = round_up(D, 128), compute dtype
                      (bf16 by default -> MXU-native, half the weight DMA).
      b3: (2, 1, Np)  f32 bias, zero-padded the same way.
    """
    two_d, D = weight.shape
    assert two_d == 2 * D, "weight must have shape (2*mod_dim, mod_dim)"
    Np = _round_up(D, 128)

    w_t = weight.T.astype(compute_dtype)                # (D, 2D)
    w3 = jnp.zeros((2, D, Np), compute_dtype)
    w3 = w3.at[0, :, :D].set(w_t[:, :D])                # value half
    w3 = w3.at[1, :, :D].set(w_t[:, D:])                # gate half

    b3 = jnp.zeros((2, 1, Np), jnp.float32)
    b3 = b3.at[0, 0, :D].set(bias[:D].astype(jnp.float32))
    b3 = b3.at[1, 0, :D].set(bias[D:].astype(jnp.float32))
    return w3, b3


def gated_block(x, w3, b3, *, tm=None, tn=None, gate_fn=None):
    """Pallas GatedBlock forward.  w3, b3 come from prepare_params()."""
    two, D, Np = w3.shape
    assert two == 2 and x.shape[-1] == D
    gate_fn = _fast_sigmoid if gate_fn is None else gate_fn

    lead = x.shape[:-1]
    M = 1
    for s in lead:
        M *= s
    x2 = x.reshape(M, D)                    # metadata-only reshape, no HBM pass

    cdtype = w3.dtype
    c_item = jnp.dtype(cdtype).itemsize
    x_item = jnp.dtype(x.dtype).itemsize
    o_item = x_item
    align = 16 if c_item == 2 else 8        # bf16 packs 16 rows / sublane tile

    # ---- column (output-feature) tiling: keep the weight resident when it is
    # small, stream it in tn-wide slabs otherwise (bounds VMEM independent of
    # mod_dim; required on v7x's 64 MiB VMEM for mod_dim >~ 2-4K).
    if tn is None:
        if 2 * D * Np * c_item <= (8 << 20):
            tn = Np
        elif Np % 512 == 0:
            tn = 512
        elif Np % 256 == 0:
            tn = 256
        else:
            tn = 128
    assert Np % tn == 0 and tn % 128 == 0
    n_col = Np // tn
    resident = n_col == 1

    # ---- row tiling: NO wrapper-side row padding; the last (ragged) row tile
    # is handled by Pallas' masked reads/writes at the grid edge.
    if tm is None:
        tm = min(512, _round_up(max(M, 1), align))
        cap_rows = ((8 << 20) // max(1, 2 * x_item * D)) // align * align
        tm = max(align, min(tm, max(align, cap_rows)))
    else:
        tm = _round_up(max(tm, 1), align)
    n_rows = _cdiv(M, tm)
    # TODO(synk): on 2-TensorCore parts (v7x) split tm when n_rows == 1 so both
    # cores get work (needs a reliable core-count query).

    # ---- output layout: lane-dense blocks; only pay a post-slice pass in the
    # rare "large D not multiple of 128" streaming case.
    if Np == D:
        out_cols, out_bn, post_slice = D, tn, False
    elif resident:
        out_cols, out_bn, post_slice = D, D, False   # kernel stores only D lanes
    else:
        # TODO(synk): avoid this extra slice pass with ragged lane-dim writes.
        out_cols, out_bn, post_slice = Np, tn, True

    w_map = lambda i, j: (0, 0, j)
    b_map = lambda i, j: (0, 0, j)
    if resident:
        # Constant block -> a single buffer is enough (halves the largest alloc).
        w_spec = pl.BlockSpec((2, D, tn), w_map, pipeline_mode=pl.Buffered(1))
        b_spec = pl.BlockSpec((2, 1, tn), b_map, pipeline_mode=pl.Buffered(1))
        w_bufs = 1
    else:
        w_spec = pl.BlockSpec((2, D, tn), w_map)
        b_spec = pl.BlockSpec((2, 1, tn), b_map)
        w_bufs = 2

    # ---- VMEM budget: pipelined buffers x their counts + f32 transients.
    vmem_bytes = (2 * tm * D * x_item                  # x tile, double-buffered
                  + w_bufs * 2 * D * tn * c_item       # weight slab(s)
                  + w_bufs * 2 * tn * 4                # bias slab(s)
                  + 2 * tm * out_bn * o_item           # out tile, double-buffered
                  + tm * D * c_item                    # in-kernel cast of x
                  + 4 * tm * tn * 4)                   # val / pre / gate / prod f32
    try:
        cap = int(pltpu.get_tpu_info().vmem_capacity_bytes) - (8 << 20)
    except Exception:
        cap = 56 << 20                                 # safe on v5e / v6e / v7x
    vmem_limit = max(16 << 20, min(int(vmem_bytes * 1.25), cap))

    out2 = pl.pallas_call(
        functools.partial(_glu_kernel, gate_fn=gate_fn),
        out_shape=jax.ShapeDtypeStruct((M, out_cols), x.dtype),
        grid=(n_rows, n_col),
        in_specs=[
            pl.BlockSpec((tm, D), lambda i, j: (i, 0)),   # rows; resident over j
            w_spec,
            b_spec,
        ],
        out_specs=pl.BlockSpec((tm, out_bn), lambda i, j: (i, j)),
        compiler_params=pltpu.CompilerParams(
            dimension_semantics=("parallel", "arbitrary"),
            vmem_limit_bytes=vmem_limit,
        ),
    )(x2, w3, b3)

    if post_slice:
        out2 = out2[:, :D]
    return out2.reshape(*lead, D)


def _init_params(key, mod_dim, dtype=jnp.float32):
    """PyTorch-style Linear init: U(-1/sqrt(fan_in), 1/sqrt(fan_in))."""
    kw, kb = jax.random.split(key)
    bound = 1.0 / (mod_dim ** 0.5)
    weight = jax.random.uniform(kw, (2 * mod_dim, mod_dim), dtype,
                                minval=-bound, maxval=bound)
    bias = jax.random.uniform(kb, (2 * mod_dim,), dtype,
                              minval=-bound, maxval=bound)
    return weight, bias


def _reference_np(x, weight, bias):
    """float64 numpy ground truth (independent of TPU matmul precision)."""
    D = x.shape[-1]
    x64 = np.asarray(x, np.float64)
    w64 = np.asarray(weight, np.float64)
    b64 = np.asarray(bias, np.float64)
    wide = x64 @ w64.T + b64
    val, gate = wide[..., :D], wide[..., D:]
    return val * (1.0 / (1.0 + np.exp(-gate)))


if __name__ == "__main__":
    mod_dim = 32
    batch, seq = 2, 8                        # leading dims -> M = 16 rows

    key = jax.random.PRNGKey(0)
    kx, kp, kx2 = jax.random.split(key, 3)
    x = jax.random.normal(kx, (batch, seq, mod_dim), dtype=jnp.float32)
    weight, bias = _init_params(kp, mod_dim)
    ref = _reference_np(x, weight, bias)

    # --- default path: bf16 operands, f32 accumulation, EUP sigmoid ---
    w3, b3 = prepare_params(weight, bias)                      # one-time prep
    out = jax.block_until_ready(gated_block(x, w3, b3))
    assert out.shape == x.shape
    assert np.all(np.isfinite(np.asarray(out)))
    assert np.allclose(np.asarray(out), ref, atol=5e-2, rtol=5e-2), \
        "bf16 path mismatch vs reference"

    # --- f32 operand path with exact sigmoid (tighter check) ---
    w3f, b3f = prepare_params(weight, bias, compute_dtype=jnp.float32)
    out_f = jax.block_until_ready(gated_block(x, w3f, b3f, gate_fn=_exact_sigmoid))
    assert out_f.shape == x.shape
    assert np.allclose(np.asarray(out_f), ref, atol=2e-2, rtol=2e-2), \
        "f32 path mismatch vs reference"

    # --- ragged row count (M=21 not a multiple of the row tile): exercises the
    # masked last tile instead of wrapper-side padding ---
    x_rag = jax.random.normal(kx2, (3, 7, mod_dim), dtype=jnp.float32)
    ref_rag = _reference_np(x_rag, weight, bias)
    out_rag = jax.block_until_ready(
        gated_block(x_rag, w3f, b3f, gate_fn=_exact_sigmoid))
    assert out_rag.shape == x_rag.shape
    assert np.allclose(np.asarray(out_rag), ref_rag, atol=2e-2, rtol=2e-2), \
        "ragged-row path mismatch vs reference"

    print("KERNEL_OK")
</pallas_src>

<mosaic_0001>
module attributes {stable_mosaic.version = 11 : i64} {
  func.func @_glu_kernel(%arg0: i32, %arg1: i32, %arg2: memref<16x32xf32, #tpu.memory_space<vmem>>, %arg3: memref<2x32x128xbf16, #tpu.memory_space<vmem>>, %arg4: memref<2x1x128xf32, #tpu.memory_space<vmem>>, %arg5: memref<16x32xf32, #tpu.memory_space<vmem>>) attributes {dimension_semantics = [#tpu.dimension_semantics<parallel>, #tpu.dimension_semantics<arbitrary>], iteration_bounds = array<i64: 1, 1>, scalar_prefetch = 0 : i64, scratch_operands = 0 : i64, tpu.core_type = #tpu.core_type<tc>, window_params = [{transform_indices = @transform_0, window_bounds = array<i64: 16, 32>}, {pipeline_mode = #tpu.pipeline_mode<synchronous>, transform_indices = @transform_1, window_bounds = array<i64: 2, 32, 128>}, {pipeline_mode = #tpu.pipeline_mode<synchronous>, transform_indices = @transform_2, window_bounds = array<i64: 2, 1, 128>}, {transform_indices = @transform_3, window_bounds = array<i64: 16, 32>}]} {
    %c0 = arith.constant 0 : index
    %c0_0 = arith.constant 0 : index
    %0 = vector.load %arg2[%c0, %c0_0] : memref<16x32xf32, #tpu.memory_space<vmem>>, vector<16x32xf32>
    %1 = arith.truncf %0 : vector<16x32xf32> to vector<16x32xbf16>
    %c0_1 = arith.constant 0 : index
    %c0_2 = arith.constant 0 : index
    %c0_3 = arith.constant 0 : index
    %2 = vector.load %arg3[%c0_1, %c0_2, %c0_3] : memref<2x32x128xbf16, #tpu.memory_space<vmem>>, vector<1x32x128xbf16>
    %3 = vector.shape_cast %2 : vector<1x32x128xbf16> to vector<32x128xbf16>
    %cst = arith.constant dense<0.000000e+00> : vector<16x128xf32>
    %4 = tpu.matmul %1, %3, %cst {dimension_numbers = #tpu.dot_dimension_numbers<[1], [0], [0], [1], [0, 0, 1, 1], [], []>} : vector<16x32xbf16>, vector<32x128xbf16>, vector<16x128xf32> -> vector<16x128xf32>
    %c0_4 = arith.constant 0 : index
    %c0_5 = arith.constant 0 : index
    %c0_6 = arith.constant 0 : index
    %5 = vector.load %arg4[%c0_4, %c0_5, %c0_6] : memref<2x1x128xf32, #tpu.memory_space<vmem>>, vector<1x1x128xf32>
    %6 = vector.shape_cast %5 : vector<1x1x128xf32> to vector<1x128xf32>
    %7 = vector.broadcast %6 : vector<1x128xf32> to vector<16x128xf32>
    %8 = arith.addf %4, %7 : vector<16x128xf32>
    %c1 = arith.constant 1 : index
    %c0_7 = arith.constant 0 : index
    %c0_8 = arith.constant 0 : index
    %9 = vector.load %arg3[%c1, %c0_7, %c0_8] : memref<2x32x128xbf16, #tpu.memory_space<vmem>>, vector<1x32x128xbf16>
    %10 = vector.shape_cast %9 : vector<1x32x128xbf16> to vector<32x128xbf16>
    %cst_9 = arith.constant dense<0.000000e+00> : vector<16x128xf32>
    %11 = tpu.matmul %1, %10, %cst_9 {dimension_numbers = #tpu.dot_dimension_numbers<[1], [0], [0], [1], [0, 0, 1, 1], [], []>} : vector<16x32xbf16>, vector<32x128xbf16>, vector<16x128xf32> -> vector<16x128xf32>
    %c1_10 = arith.constant 1 : index
    %c0_11 = arith.constant 0 : index
    %c0_12 = arith.constant 0 : index
    %12 = vector.load %arg4[%c1_10, %c0_11, %c0_12] : memref<2x1x128xf32, #tpu.memory_space<vmem>>, vector<1x1x128xf32>
    %13 = vector.shape_cast %12 : vector<1x1x128xf32> to vector<1x128xf32>
    %14 = vector.broadcast %13 : vector<1x128xf32> to vector<16x128xf32>
    %15 = arith.addf %11, %14 : vector<16x128xf32>
    %cst_13 = arith.constant 0.000000e+00 : f32
    %16 = vector.broadcast %cst_13 : f32 to vector<16x128xf32>
    %17 = arith.subf %16, %15 : vector<16x128xf32>
    %18 = math.exp %17 : vector<16x128xf32>
    %cst_14 = arith.constant 1.000000e+00 : f32
    %19 = vector.broadcast %cst_14 : f32 to vector<16x128xf32>
    %20 = arith.addf %19, %18 : vector<16x128xf32>
    %21 = tpu.reciprocal %20 {approx = true} : vector<16x128xf32> -> vector<16x128xf32>
    %22 = arith.mulf %8, %21 : vector<16x128xf32>
    %23 = vector.extract_strided_slice %22 {offsets = [0, 0], sizes = [16, 32], strides = [1, 1]} : vector<16x128xf32> to vector<16x32xf32>
    %c0_15 = arith.constant 0 : index
    %c0_16 = arith.constant 0 : index
    %24 = vector.load %arg5[%c0_15, %c0_16] : memref<16x32xf32, #tpu.memory_space<vmem>>, vector<16x32xf32>
    tpu.vector_store %arg5[%c0_15, %c0_16], %23 {strides = array<i32>} : memref<16x32xf32, #tpu.memory_space<vmem>>, vector<16x32xf32>,
    return
  }
  func.func @transform_0(%arg0: i32, %arg1: i32) -> (i32, i32) {
    %c0_i32 = arith.constant 0 : i32
    %c0_i32_0 = arith.constant 0 : i32
    return %arg0, %c0_i32 : i32, i32
  }
  func.func @transform_1(%arg0: i32, %arg1: i32) -> (i32, i32, i32) {
    %c0_i32 = arith.constant 0 : i32
    %c0_i32_0 = arith.constant 0 : i32
    %c0_i32_1 = arith.constant 0 : i32
    return %c0_i32, %c0_i32_0, %arg1 : i32, i32, i32
  }
  func.func @transform_2(%arg0: i32, %arg1: i32) -> (i32, i32, i32) {
    %c0_i32 = arith.constant 0 : i32
    %c0_i32_0 = arith.constant 0 : i32
    %c0_i32_1 = arith.constant 0 : i32
    return %c0_i32, %c0_i32_0, %arg1 : i32, i32, i32
  }
  func.func @transform_3(%arg0: i32, %arg1: i32) -> (i32, i32) {
    %c0_i32 = arith.constant 0 : i32
    return %arg0, %arg1 : i32, i32
  }
}

</mosaic_0001>

<llo_original>
// kernel: tpu_custom_call.1
$region0: #{tpu_custom_call.1}
  #allocation0 [shape = 'u32[]', space=smem, size = 0x4, offset = 0x4, fixed_abs, tag = 'smem constant byte address 0x4 - core index']
  #allocation1 [shape = 'u32[144,128]{1,0:T(1,128)}', space=vmem, size = 0x12000, scoped, tag = 'internal scratch']
  %s0 = inlined_call_operand.hbm [shape: f32[16,32], index: 0, kind: input, shape index: {}]
  %s1 = inlined_call_operand.hbm [shape: bf16[2,32,128], index: 1, kind: input, shape index: {}]
  %s2 = inlined_call_operand.vmem [shape: f32[2,1,128], index: 2, kind: input, shape index: {}]
  %s3 = inlined_call_operand.hbm [shape: f32[16,32], index: 3, kind: output, shape index: {}]
  %s4 = sld [smem:[#allocation0]]
  $region30: #{tpu_custom_call.1} parent=0
    _
  %s6 = ssub.s32 1, %s4
  %s7 = scalar_select 0, %s6, %s4
  $region1: #{tpu_custom_call.1} parent=0
    #allocation2 [shape = 'u8[8192]{0}', space=vmem, size = 0x2000, scoped, tag = 'input window, operand 0, single buffered']
    #allocation3 [shape = 's32[1]{0}', space=sflag, size = 0x4, scoped, tag = 'scoped memory for tpu_custom_call.1']
    #allocation4 [shape = 's32[1]{0}', space=sflag, size = 0x4, scoped, tag = 'scoped memory for tpu_custom_call.1']
    #allocation5 [shape = 'u8[16384]{0}', space=vmem, size = 0x4000, scoped, tag = 'input window, operand 1, single buffered']
    #allocation6 [shape = 's32[1]{0}', space=sflag, size = 0x4, scoped, tag = 'scoped memory for tpu_custom_call.1']
    #allocation7 [shape = 'u8[8192]{0}', space=vmem, size = 0x2000, scoped, tag = 'output window, operand 0, single buffered']
    %8 = vsyncpa [#allocation3], 0
    %9 = vsyncpa [#allocation6], 0
    %10 = vsyncpa [#allocation4], 0
    // Predicated region
    $region2: #{tpu_custom_call.1} parent=1 // pred_check
      _
    $region3: #{tpu_custom_call.1} parent=1 // pred_check_branch
      %12 = sbr.rel (0) target = $region5
    $region4: #{tpu_custom_call.1} parent=1 // pred_region
      %s14 = ssub.s32 256, 256
      %15 = vsyncadd [#allocation3], %s14
      %s16 = sshll.u32 [#allocation2], 4
      %s17 = int_to_ptr.vmem [resolvable:$true] %s16
      %22 = dma.hbm_to_vmem [thread:$0]  %s0, 256, %s17, [#allocation3], 128, 128, 8
    $region5: #{tpu_custom_call.1} parent=1 // pred_fallthru
      _
    // Predicated region
    $region6: #{tpu_custom_call.1} parent=1 // pred_check
      _
    $region7: #{tpu_custom_call.1} parent=1 // pred_check_branch
      %24 = sbr.rel (0) target = $region9
    $region8: #{tpu_custom_call.1} parent=1 // pred_region
      %s26 = ssub.s32 512, 512
      %27 = vsyncadd [#allocation6], %s26
      %s28 = sshll.u32 [#allocation5], 4
      %s29 = int_to_ptr.vmem [resolvable:$true] %s28
      %34 = dma.hbm_to_vmem [thread:$0]  %s1, 512, %s29, [#allocation6], 64, 64, 4
    $region9: #{tpu_custom_call.1} parent=1 // pred_fallthru
      _
    // Predicated region
    $region10: #{tpu_custom_call.1} parent=1 // pred_check
      _
    $region11: #{tpu_custom_call.1} parent=1 // pred_check_branch
      %36 = sbr.rel (0) target = $region13
    $region12: #{tpu_custom_call.1} parent=1 // pred_region
      _
    $region13: #{tpu_custom_call.1} parent=1 // pred_fallthru
      _
    // Predicated region
    $region14: #{tpu_custom_call.1} parent=1 // pred_check
      _
    $region15: #{tpu_custom_call.1} parent=1 // pred_check_branch
      %38 = sbr.rel (0) target = $region17
    $region16: #{tpu_custom_call.1} parent=1 // pred_region
      %39 = dma.done [#allocation3], 256
    $region17: #{tpu_custom_call.1} parent=1 // pred_fallthru
      _
    // Predicated region
    $region18: #{tpu_custom_call.1} parent=1 // pred_check
      _
    $region19: #{tpu_custom_call.1} parent=1 // pred_check_branch
      %41 = sbr.rel (0) target = $region21
    $region20: #{tpu_custom_call.1} parent=1 // pred_region
      %42 = dma.done [#allocation6], 512
    $region21: #{tpu_custom_call.1} parent=1 // pred_fallthru
      _
    %v44 = vld [vmem:[#allocation2] sm:$0xff]
    %v45 = vld [vmem:[#allocation2 + $0x8] sm:$0xff]
    %v46 = vpack.c.bf16 %v45, %v44
    %v47 = vld [vmem:[#allocation5] sm:$0xf]
    %v48 = vld [vmem:[#allocation5 + $0x4] sm:$0xf]
    %v49 = vld [vmem:[#allocation5 + $0x8] sm:$0xf]
    %v50 = vld [vmem:[#allocation5 + $0xc] sm:$0xf]
    %v51 = vld [vmem:[%s2] sm:$0x1]
    %v53 = vlaneseq
    %v54 = vshrl.u32 %v53, 7
    %v55 = vsub.s32 0, %v54
    %v56 = vrot.slane %v51, %v55
    %v62 = vunpack.c.l.b16 %v47
    %v63 = vunpack.c.l.b16 %v48
    %v64 = vunpack.c.l.b16 %v49
    %v65 = vunpack.c.l.b16 %v50
    %v66 = vpack.c.b16 %v63, %v62
    %v67 = vpack.c.b16 %v65, %v64
    %vm70 = vcmask 261120
    %v72 = vsel %vm70, %v46, 0
    %74 = vmatprep.subr.bf16.mxu0 0
    %75 = vmatpush1.bf16.msra.mxu0 %v66
    %76 = vmatprep.subr.bf16.mxu0 0
    %77 = vmatpush1.bf16.msra.mxu0 %v67
    %78 = vmatprep.subr.bf16.mxu0 0
    %79 = vmatpush1.bf16.msra.mxu0 0
    %80 = vmatprep.subr.bf16.mxu0 0
    %81 = vmatpush1.bf16.msra.mxu0 0
    %82 = vmatprep.subr.bf16.mxu0 0
    %83 = vmatpush1.bf16.msra.mxu0 0
    %84 = vmatprep.subr.bf16.mxu0 0
    %85 = vmatpush1.bf16.msra.mxu0 0
    %86 = vmatprep.subr.bf16.mxu0 0
    %87 = vmatpush1.bf16.msra.mxu0 0
    %88 = vmatprep.subr.bf16.mxu0 0
    %89 = vmatpush1.bf16.msra.mxu0 0
    %90 = vmatprep.subr.bf16.mxu0 0
    %91 = vmatpush1.bf16.msra.mxu0 0
    %92 = vmatprep.subr.bf16.mxu0 0
    %93 = vmatpush1.bf16.msra.mxu0 0
    %94 = vmatprep.subr.bf16.mxu0 0
    %95 = vmatpush1.bf16.msra.mxu0 0
    %96 = vmatprep.subr.bf16.mxu0 0
    %97 = vmatpush1.bf16.msra.mxu0 0
    %98 = vmatprep.subr.bf16.mxu0 0
    %99 = vmatpush1.bf16.msra.mxu0 0
    %100 = vmatprep.subr.bf16.mxu0 0
    %101 = vmatpush1.bf16.msra.mxu0 0
    %102 = vmatprep.subr.bf16.mxu0 0
    %103 = vmatpush1.bf16.msra.mxu0 0
    %104 = vmatprep.subr.bf16.mxu0 0
    %105 = vmatpush1.bf16.msra.mxu0 0
    %106 = vmatprep.mubr.bf16.mxu0 0
    %107 = vmatmul.mubr.bf16.gmra.mrb[0].mxu0 %v72
    %v108 = vpop.f32.mrb[0].mxu0
    %v109 = vadd.f32 %v56, %v108
    %v110 = vpop.f32.mrb[0].mxu0
    %v111 = vpop.f32.mrb[0].mxu0
    %v112 = vadd.f32 %v56, %v111
    %v113 = vpop.f32.mrb[0].mxu0
    %114 = vdwg.mxu0
    %s115 = scalar_lea.vmem [#allocation5], 16
    %v116 = vld [vmem:[%s115] sm:$0xf]
    %v117 = vld [vmem:[%s115 + $0x4] sm:$0xf]
    %v118 = vld [vmem:[%s115 + $0x8] sm:$0xf]
    %v119 = vld [vmem:[%s115 + $0xc] sm:$0xf]
    %s120 = scalar_lea.vmem %s2, 1
    %v121 = vld [vmem:[%s120] sm:$0x1]
    %v123 = vlaneseq
    %v124 = vshrl.u32 %v123, 7
    %v125 = vsub.s32 0, %v124
    %v126 = vrot.slane %v121, %v125
    %v132 = vunpack.c.l.b16 %v116
    %v133 = vunpack.c.l.b16 %v117
    %v134 = vunpack.c.l.b16 %v118
    %v135 = vunpack.c.l.b16 %v119
    %v136 = vpack.c.b16 %v133, %v132
    %v137 = vpack.c.b16 %v135, %v134
    %140 = vmatprep.subr.bf16.mxu0 0
    %141 = vmatpush1.bf16.msra.mxu0 %v136
    %142 = vmatprep.subr.bf16.mxu0 0
    %143 = vmatpush1.bf16.msra.mxu0 %v137
    %144 = vmatprep.subr.bf16.mxu0 0
    %145 = vmatpush1.bf16.msra.mxu0 0
    %146 = vmatprep.subr.bf16.mxu0 0
    %147 = vmatpush1.bf16.msra.mxu0 0
    %148 = vmatprep.subr.bf16.mxu0 0
    %149 = vmatpush1.bf16.msra.mxu0 0
    %150 = vmatprep.subr.bf16.mxu0 0
    %151 = vmatpush1.bf16.msra.mxu0 0
    %152 = vmatprep.subr.bf16.mxu0 0
    %153 = vmatpush1.bf16.msra.mxu0 0
    %154 = vmatprep.subr.bf16.mxu0 0
    %155 = vmatpush1.bf16.msra.mxu0 0
    %156 = vmatprep.subr.bf16.mxu0 0
    %157 = vmatpush1.bf16.msra.mxu0 0
    %158 = vmatprep.subr.bf16.mxu0 0
    %159 = vmatpush1.bf16.msra.mxu0 0
    %160 = vmatprep.subr.bf16.mxu0 0
    %161 = vmatpush1.bf16.msra.mxu0 0
    %162 = vmatprep.subr.bf16.mxu0 0
    %163 = vmatpush1.bf16.msra.mxu0 0
    %164 = vmatprep.subr.bf16.mxu0 0
    %165 = vmatpush1.bf16.msra.mxu0 0
    %166 = vmatprep.subr.bf16.mxu0 0
    %167 = vmatpush1.bf16.msra.mxu0 0
    %168 = vmatprep.subr.bf16.mxu0 0
    %169 = vmatpush1.bf16.msra.mxu0 0
    %170 = vmatprep.subr.bf16.mxu0 0
    %171 = vmatpush1.bf16.msra.mxu0 0
    %172 = vmatprep.mubr.bf16.mxu0 0
    %173 = vmatmul.mubr.bf16.gmra.mrb[0].mxu0 %v72
    %v174 = vpop.f32.mrb[0].mxu0
    %v175 = vadd.f32 %v126, %v174
    %v176 = vpop.f32.mrb[0].mxu0
    %v177 = vpop.f32.mrb[0].mxu0
    %v178 = vadd.f32 %v126, %v177
    %v179 = vpop.f32.mrb[0].mxu0
    %180 = vdwg.mxu0
    %v181 = vsub.f32 0.0, %v175
    %v182 = vsub.f32 0.0, %v178
    %v183 = vmul.f32 %v181, 1.442695
    %v184 = vpow.pop %v183
    %v185 = vmul.f32 %v182, 1.442695
    %v186 = vpow.pop %v185
    %v187 = vadd.f32 %v184, 1.0
    %v188 = vadd.f32 %v186, 1.0
    %v189 = vrcp.pop %v187
    %v190 = vrcp.pop %v188
    %v191 = vmul.f32 %v109, %v189
    %v192 = vmul.f32 %v112, %v190
    %193 = vst.msk [vmem:[#allocation7] sm:$0xff] %vm70, %v191
    %194 = vst.msk [vmem:[#allocation7 + $0x8] sm:$0xff] %vm70, %v192
    // Predicated region
    $region22: #{tpu_custom_call.1} parent=1 // pred_check
      _
    $region23: #{tpu_custom_call.1} parent=1 // pred_check_branch
      %196 = sbr.rel (0) target = $region25
    $region24: #{tpu_custom_call.1} parent=1 // pred_region
      %s198 = ssub.s32 256, 256
      %199 = vsyncadd [#allocation4], %s198
      %s200 = sshll.u32 [#allocation7], 4
      %s201 = int_to_ptr.vmem [resolvable:$true] %s200
      %206 = dma.vmem_to_hbm [thread:$0]  %s201, 256, %s3, [#allocation4], 128, 128, 8
    $region25: #{tpu_custom_call.1} parent=1 // pred_fallthru
      _
    // Predicated region
    $region26: #{tpu_custom_call.1} parent=1 // pred_check
      _
    $region27: #{tpu_custom_call.1} parent=1 // pred_check_branch
      %208 = sbr.rel (0) target = $region29
    $region28: #{tpu_custom_call.1} parent=1 // pred_region
      %209 = dma.done [#allocation4], 256
    $region29: #{tpu_custom_call.1} parent=1 // pred_fallthru
      _
    %210 = vsyncpa [#allocation3], 1
    %211 = vsyncpa [#allocation6], 1
    %212 = vsyncpa [#allocation4], 1

</llo_original>
